<compile_context>
chip_gen: v6e
topology: v6e:2x2x1
jax: 0.10.0
libtpu: 0.0.40
codegen_flags: <defaults>
</compile_context>

<pallas_src>
import math
import jax
import jax.numpy as jnp
from jax.experimental import pallas as pl
from jax.experimental.pallas import tpu as pltpu


def _make_lstm_cell_kernel(tn, gate_dtype=None):
    """Kernel over one (block_b, 4*tn) gate tile.  tn = gate columns per tile."""

    def kernel(h_ref, c_ref, w_ref, b_ref, h_out_ref, c_out_ref):
        w = w_ref[...]
        h = h_ref[...]
        # Cast the (small) activation tile to the weight dtype; weights are
        # pre-cast once at fuse_params() and never cast in-kernel.
        if h.dtype != w.dtype:
            h = h.astype(w.dtype)

        # Single fused gate matmul on the MXU: [B, hd] x [hd, 4*tn] -> [B, 4*tn].
        z = jnp.dot(h, w, preferred_element_type=jnp.float32)
        z = z + b_ref[...].astype(jnp.float32)

        # Static, 128-aligned slices for the four gates (order: i, f, g, o).
        zi = z[:, 0 * tn:1 * tn]
        zf = z[:, 1 * tn:2 * tn]
        zg = z[:, 2 * tn:3 * tn]
        zo = z[:, 3 * tn:4 * tn]
        c = c_ref[...]

        if gate_dtype is not None:
            # bf16 gate math: 2x EUP throughput on v6e/v7x (EUP is the
            # saturating slot at LSTM-sized K).  Don't use on v5e.
            zi, zf, zg, zo = (t.astype(gate_dtype) for t in (zi, zf, zg, zo))
            c = c.astype(gate_dtype)
        else:
            c = c.astype(jnp.float32)

        # sigmoid(x) == 0.5*tanh(0.5*x) + 0.5 -> one EUP op + cheap VPU work.
        i = 0.5 * jnp.tanh(0.5 * zi) + 0.5
        f = 0.5 * jnp.tanh(0.5 * zf) + 0.5
        o = 0.5 * jnp.tanh(0.5 * zo) + 0.5
        g = jnp.tanh(zg)

        c_prime = f * c + i * g
        h_prime = o * jnp.tanh(c_prime)

        h_out_ref[...] = h_prime.astype(h_out_ref.dtype)
        c_out_ref[...] = c_prime.astype(c_out_ref.dtype)

    return kernel


def _round_up(x, m):
    return ((x + m - 1) // m) * m


def _default_block_b(B, hd, cd):
    # Per-grid-step overhead is ~0.35 us; only split a small batch when the
    # weight tile is big enough that MXU / weight-DMA work dominates that.
    compute_heavy = hd * 4 * cd >= (1 << 20)
    if B <= 16 or not compute_heavy:
        return min(B, 256)
    if B <= 256:
        # >=2 grid steps so dimension_semantics=("parallel",...) can shard the
        # batch axis across both TensorCores on v7x.
        return min(B, _round_up(pl.cdiv(B, 2), 8))
    # Large batch: 256 rows fills the 2x256 MXU M dim on v6e/v7x.
    return 256


def _vmem_limit_bytes(block_b, hd, tn, nn, w_itemsize, x_itemsize):
    """Scoped-VMEM budget sized to the actual buffers (review item)."""
    w_bufs = 1 if nn == 1 else 2                       # single-buffered constants
    need = w_bufs * (hd * 4 * tn + 4 * tn) * w_itemsize
    need += 2 * block_b * (hd + tn) * x_itemsize       # double-buffered hprev/cprev
    need += 2 * 2 * block_b * tn * x_itemsize          # double-buffered h'/c' outputs
    need += 8 * block_b * 4 * tn * 4                   # f32 in-kernel intermediates
    return int(min(max(2 * need, 16 * 1024 * 1024), 64 * 1024 * 1024))


def lstm_cell_hidden(hprev, cprev, w_gates, b_gates, *, block_b=None,
                     block_n=None, gate_dtype=None):
    """Fused LSTMCellHidden forward.

    hprev:   [B, hidden_dim]
    cprev:   [B, cell_dim]
    w_gates: [hidden_dim, 4*cell_dim]  from fuse_params() (same block_n!)
    b_gates: [1, 4*cell_dim]           from fuse_params() (same block_n!)
    block_n: gate-column tile (None => whole 4*cell_dim tile, weights kept
             resident & single-buffered).  When set, w_gates/b_gates must be in
             the interleaved layout produced by fuse_params(block_n=block_n).
    gate_dtype: e.g. jnp.bfloat16 for bf16 gate math on v6e/v7x (looser accuracy).

    Returns (hprime [B, cell_dim], cprime [B, cell_dim]).
    Note: hprime is [B, cell_dim] (matches the PyTorch module); it can only be
    fed back as hprev when hidden_dim == cell_dim.
    """
    B, hd = hprev.shape
    Bc, cd = cprev.shape
    assert Bc == B
    assert w_gates.shape == (hd, 4 * cd), w_gates.shape
    assert b_gates.shape == (1, 4 * cd), b_gates.shape
    # Lane/sublane alignment: keeps the gate slices layout-free and the stores
    # unmasked.  For MXU utilization hd >= 128 is recommended (pad at init).
    assert cd % 128 == 0, "cell_dim must be a multiple of 128 (pad at init)"
    assert hd % 8 == 0, "hidden_dim must be a multiple of 8"

    if block_n is None:
        block_n = cd
    assert cd % block_n == 0 and block_n % 128 == 0, (cd, block_n)
    nn = cd // block_n

    if block_b is None:
        block_b = _default_block_b(B, hd, cd)
    nb = pl.cdiv(B, block_b)

    kernel = _make_lstm_cell_kernel(block_n, gate_dtype=gate_dtype)
    vmem_limit = _vmem_limit_bytes(
        block_b, hd, block_n, nn,
        jnp.dtype(w_gates.dtype).itemsize, jnp.dtype(hprev.dtype).itemsize)

    def build(single_buffer_consts):
        # Constant blocks (index_map independent of the grid) are never
        # re-fetched; single-buffering them halves their VMEM footprint.
        const_kwargs = ({"pipeline_mode": pl.Buffered(1)}
                        if single_buffer_consts else {})
        return pl.pallas_call(
            kernel,
            out_shape=(
                jax.ShapeDtypeStruct((B, cd), hprev.dtype),
                jax.ShapeDtypeStruct((B, cd), cprev.dtype),
            ),
            grid_spec=pltpu.PrefetchScalarGridSpec(
                num_scalar_prefetch=0,
                # n outer, b inner: the weight tile index is constant across
                # the inner batch loop, so it is not re-fetched per batch tile.
                grid=(nn, nb),
                in_specs=[
                    pl.BlockSpec((block_b, hd), lambda n, b: (b, 0)),       # hprev
                    pl.BlockSpec((block_b, block_n), lambda n, b: (b, n)),  # cprev
                    pl.BlockSpec((hd, 4 * block_n), lambda n, b: (0, n),    # w_gates
                                 **const_kwargs),
                    pl.BlockSpec((1, 4 * block_n), lambda n, b: (0, n),     # b_gates
                                 **const_kwargs),
                ],
                out_specs=[
                    pl.BlockSpec((block_b, block_n), lambda n, b: (b, n)),  # hprime
                    pl.BlockSpec((block_b, block_n), lambda n, b: (b, n)),  # cprime
                ],
            ),
            compiler_params=pltpu.CompilerParams(
                dimension_semantics=("parallel", "parallel"),
                vmem_limit_bytes=vmem_limit),
        )

    try:
        return build(single_buffer_consts=(nn == 1))(hprev, cprev, w_gates, b_gates)
    except Exception:
        # Fallback for JAX versions without per-BlockSpec pipeline_mode support.
        return build(single_buffer_consts=False)(hprev, cprev, w_gates, b_gates)


def init_params(key, hidden_dim, cell_dim, dtype=jnp.float32):
    """Matches reset_parameters(): weights ~ U(-1/sqrt(hd), 1/sqrt(hd)); biases zero."""
    stdv = 1.0 / math.sqrt(hidden_dim)
    keys = jax.random.split(key, 4)
    params = {}
    for k, name in zip(keys, ["w_hi", "w_hf", "w_hg", "w_ho"]):
        params[name] = jax.random.uniform(
            k, (hidden_dim, cell_dim), dtype=dtype, minval=-stdv, maxval=stdv)
    for name in ["b_hi", "b_hf", "b_hg", "b_ho"]:
        params[name] = jnp.zeros((1, cell_dim), dtype=dtype)
    return params


def fuse_params(params, *, dtype=None, block_n=None):
    """One-time fusion (do this at init / parameter load, not per call).

    dtype:   pre-cast weights+biases (e.g. jnp.bfloat16) so no in-kernel cast
             and half the weight HBM/VMEM traffic on v5e/v6e/v7x.
    block_n: produce the interleaved layout [hd, n_tiles * 4*block_n] where the
             4 gates' columns for output tile n are contiguous; required when
             calling lstm_cell_hidden(..., block_n=block_n).
    """
    w = jnp.concatenate(
        [params["w_hi"], params["w_hf"], params["w_hg"], params["w_ho"]], axis=1)
    b = jnp.concatenate(
        [params["b_hi"], params["b_hf"], params["b_hg"], params["b_ho"]], axis=1)
    hd = w.shape[0]
    cd = w.shape[1] // 4
    if block_n is not None and block_n != cd:
        assert cd % block_n == 0
        nn = cd // block_n
        w = (w.reshape(hd, 4, nn, block_n).transpose(0, 2, 1, 3)
              .reshape(hd, nn * 4 * block_n))
        b = (b.reshape(1, 4, nn, block_n).transpose(0, 2, 1, 3)
              .reshape(1, nn * 4 * block_n))
    if dtype is not None:
        w = w.astype(dtype)
        b = b.astype(dtype)
    return w, b


def _reference(hprev, cprev, p):
    """Pure-JAX reference mirroring the PyTorch forward exactly."""
    i = jax.nn.sigmoid(hprev @ p["w_hi"] + p["b_hi"])
    f = jax.nn.sigmoid(hprev @ p["w_hf"] + p["b_hf"])
    g = jnp.tanh(hprev @ p["w_hg"] + p["b_hg"])
    o = jax.nn.sigmoid(hprev @ p["w_ho"] + p["b_ho"])
    cprime = f * cprev + i * g
    hprime = o * jnp.tanh(cprime)
    return hprime, cprime


if __name__ == "__main__":
    key = jax.random.PRNGKey(0)
    k_param, k_h, k_c, k_param2, k_c2 = jax.random.split(key, 5)

    # --- Case 1: small module shapes, f32, whole-4cd resident weight tile ---
    B, hidden_dim, cell_dim = 8, 32, 128
    params = init_params(k_param, hidden_dim, cell_dim)
    w_gates, b_gates = fuse_params(params)

    hprev = jax.random.normal(k_h, (B, hidden_dim), dtype=jnp.float32)
    cprev = jax.random.normal(k_c, (B, cell_dim), dtype=jnp.float32)

    hprime, cprime = lstm_cell_hidden(hprev, cprev, w_gates, b_gates)
    jax.block_until_ready((hprime, cprime))
    h_ref, c_ref = _reference(hprev, cprev, params)
    assert hprime.shape == (B, cell_dim) and cprime.shape == (B, cell_dim)
    assert jnp.allclose(hprime, h_ref, atol=1e-5, rtol=1e-5)
    assert jnp.allclose(cprime, c_ref, atol=1e-5, rtol=1e-5)

    # --- Case 2: gate-column-tiled weight layout (v7x large-weight path) ----
    cell_dim2, block_n = 256, 128
    params2 = init_params(k_param2, hidden_dim, cell_dim2)
    w2, b2 = fuse_params(params2, block_n=block_n)
    cprev2 = jax.random.normal(k_c2, (B, cell_dim2), dtype=jnp.float32)
    hprime2, cprime2 = lstm_cell_hidden(hprev, cprev2, w2, b2, block_n=block_n)
    jax.block_until_ready((hprime2, cprime2))
    h_ref2, c_ref2 = _reference(hprev, cprev2, params2)
    assert jnp.allclose(hprime2, h_ref2, atol=1e-5, rtol=1e-5)
    assert jnp.allclose(cprime2, c_ref2, atol=1e-5, rtol=1e-5)

    # --- Case 3: bf16 weights + bf16 gate math (v6e/v7x bandwidth/EUP path) --
    # Pre-cast at fuse time; looser tolerance vs. the f32 reference (documented).
    wb, bb = fuse_params(params, dtype=jnp.bfloat16)
    hprime3, cprime3 = lstm_cell_hidden(hprev, cprev, wb, bb,
                                        gate_dtype=jnp.bfloat16)
    jax.block_until_ready((hprime3, cprime3))
    assert jnp.allclose(hprime3, h_ref, atol=5e-2, rtol=5e-2)
    assert jnp.allclose(cprime3, c_ref, atol=5e-2, rtol=5e-2)

    print("KERNEL_OK")
</pallas_src>

<mosaic_0001>
module attributes {stable_mosaic.version = 11 : i64} {
  func.func @kernel(%arg0: i32, %arg1: i32, %arg2: memref<8x32xf32, #tpu.memory_space<vmem>>, %arg3: memref<8x128xf32, #tpu.memory_space<vmem>>, %arg4: memref<32x512xf32, #tpu.memory_space<vmem>>, %arg5: memref<1x512xf32, #tpu.memory_space<vmem>>, %arg6: memref<8x128xf32, #tpu.memory_space<vmem>>, %arg7: memref<8x128xf32, #tpu.memory_space<vmem>>) attributes {dimension_semantics = [#tpu.dimension_semantics<parallel>, #tpu.dimension_semantics<parallel>], iteration_bounds = array<i64: 1, 1>, scalar_prefetch = 0 : i64, scratch_operands = 0 : i64, tpu.core_type = #tpu.core_type<tc>, window_params = [{transform_indices = @transform_0, window_bounds = array<i64: 8, 32>}, {transform_indices = @transform_1, window_bounds = array<i64: 8, 128>}, {pipeline_mode = #tpu.pipeline_mode<synchronous>, transform_indices = @transform_2, window_bounds = array<i64: 32, 512>}, {pipeline_mode = #tpu.pipeline_mode<synchronous>, transform_indices = @transform_3, window_bounds = array<i64: 1, 512>}, {transform_indices = @transform_4, window_bounds = array<i64: 8, 128>}, {transform_indices = @transform_5, window_bounds = array<i64: 8, 128>}]} {
    %c0 = arith.constant 0 : index
    %c0_0 = arith.constant 0 : index
    %0 = vector.load %arg4[%c0, %c0_0] : memref<32x512xf32, #tpu.memory_space<vmem>>, vector<32x512xf32>
    %c0_1 = arith.constant 0 : index
    %c0_2 = arith.constant 0 : index
    %1 = vector.load %arg2[%c0_1, %c0_2] : memref<8x32xf32, #tpu.memory_space<vmem>>, vector<8x32xf32>
    %cst = arith.constant dense<0.000000e+00> : vector<8x512xf32>
    %2 = tpu.matmul %1, %0, %cst {dimension_numbers = #tpu.dot_dimension_numbers<[1], [0], [0], [1], [0, 0, 1, 1], [], []>} : vector<8x32xf32>, vector<32x512xf32>, vector<8x512xf32> -> vector<8x512xf32>
    %c0_3 = arith.constant 0 : index
    %c0_4 = arith.constant 0 : index
    %3 = vector.load %arg5[%c0_3, %c0_4] : memref<1x512xf32, #tpu.memory_space<vmem>>, vector<1x512xf32>
    %4 = vector.broadcast %3 : vector<1x512xf32> to vector<8x512xf32>
    %5 = arith.addf %2, %4 : vector<8x512xf32>
    %6 = vector.extract_strided_slice %5 {offsets = [0, 0], sizes = [8, 128], strides = [1, 1]} : vector<8x512xf32> to vector<8x128xf32>
    %7 = vector.extract_strided_slice %5 {offsets = [0, 128], sizes = [8, 128], strides = [1, 1]} : vector<8x512xf32> to vector<8x128xf32>
    %8 = vector.extract_strided_slice %5 {offsets = [0, 256], sizes = [8, 128], strides = [1, 1]} : vector<8x512xf32> to vector<8x128xf32>
    %9 = vector.extract_strided_slice %5 {offsets = [0, 384], sizes = [8, 128], strides = [1, 1]} : vector<8x512xf32> to vector<8x128xf32>
    %c0_5 = arith.constant 0 : index
    %c0_6 = arith.constant 0 : index
    %10 = vector.load %arg3[%c0_5, %c0_6] : memref<8x128xf32, #tpu.memory_space<vmem>>, vector<8x128xf32>
    %cst_7 = arith.constant 5.000000e-01 : f32
    %11 = vector.broadcast %cst_7 : f32 to vector<8x128xf32>
    %12 = arith.mulf %11, %6 : vector<8x128xf32>
    %13 = math.tanh %12 : vector<8x128xf32>
    %cst_8 = arith.constant 5.000000e-01 : f32
    %14 = vector.broadcast %cst_8 : f32 to vector<8x128xf32>
    %15 = arith.mulf %14, %13 : vector<8x128xf32>
    %cst_9 = arith.constant 5.000000e-01 : f32
    %16 = vector.broadcast %cst_9 : f32 to vector<8x128xf32>
    %17 = arith.addf %15, %16 : vector<8x128xf32>
    %cst_10 = arith.constant 5.000000e-01 : f32
    %18 = vector.broadcast %cst_10 : f32 to vector<8x128xf32>
    %19 = arith.mulf %18, %7 : vector<8x128xf32>
    %20 = math.tanh %19 : vector<8x128xf32>
    %cst_11 = arith.constant 5.000000e-01 : f32
    %21 = vector.broadcast %cst_11 : f32 to vector<8x128xf32>
    %22 = arith.mulf %21, %20 : vector<8x128xf32>
    %cst_12 = arith.constant 5.000000e-01 : f32
    %23 = vector.broadcast %cst_12 : f32 to vector<8x128xf32>
    %24 = arith.addf %22, %23 : vector<8x128xf32>
    %cst_13 = arith.constant 5.000000e-01 : f32
    %25 = vector.broadcast %cst_13 : f32 to vector<8x128xf32>
    %26 = arith.mulf %25, %9 : vector<8x128xf32>
    %27 = math.tanh %26 : vector<8x128xf32>
    %cst_14 = arith.constant 5.000000e-01 : f32
    %28 = vector.broadcast %cst_14 : f32 to vector<8x128xf32>
    %29 = arith.mulf %28, %27 : vector<8x128xf32>
    %cst_15 = arith.constant 5.000000e-01 : f32
    %30 = vector.broadcast %cst_15 : f32 to vector<8x128xf32>
    %31 = arith.addf %29, %30 : vector<8x128xf32>
    %32 = math.tanh %8 : vector<8x128xf32>
    %33 = arith.mulf %24, %10 : vector<8x128xf32>
    %34 = arith.mulf %17, %32 : vector<8x128xf32>
    %35 = arith.addf %33, %34 : vector<8x128xf32>
    %36 = math.tanh %35 : vector<8x128xf32>
    %37 = arith.mulf %31, %36 : vector<8x128xf32>
    %c0_16 = arith.constant 0 : index
    %c0_17 = arith.constant 0 : index
    %38 = vector.load %arg6[%c0_16, %c0_17] : memref<8x128xf32, #tpu.memory_space<vmem>>, vector<8x128xf32>
    tpu.vector_store %arg6[%c0_16, %c0_17], %37 {strides = array<i32>} : memref<8x128xf32, #tpu.memory_space<vmem>>, vector<8x128xf32>,
    %c0_18 = arith.constant 0 : index
    %c0_19 = arith.constant 0 : index
    %39 = vector.load %arg7[%c0_18, %c0_19] : memref<8x128xf32, #tpu.memory_space<vmem>>, vector<8x128xf32>
    tpu.vector_store %arg7[%c0_18, %c0_19], %35 {strides = array<i32>} : memref<8x128xf32, #tpu.memory_space<vmem>>, vector<8x128xf32>,
    return
  }
  func.func @transform_0(%arg0: i32, %arg1: i32) -> (i32, i32) {
    %c0_i32 = arith.constant 0 : i32
    %c0_i32_0 = arith.constant 0 : i32
    return %arg1, %c0_i32 : i32, i32
  }
  func.func @transform_1(%arg0: i32, %arg1: i32) -> (i32, i32) {
    %c0_i32 = arith.constant 0 : i32
    return %arg1, %arg0 : i32, i32
  }
  func.func @transform_2(%arg0: i32, %arg1: i32) -> (i32, i32) {
    %c0_i32 = arith.constant 0 : i32
    %c0_i32_0 = arith.constant 0 : i32
    return %c0_i32, %arg0 : i32, i32
  }
  func.func @transform_3(%arg0: i32, %arg1: i32) -> (i32, i32) {
    %c0_i32 = arith.constant 0 : i32
    %c0_i32_0 = arith.constant 0 : i32
    return %c0_i32, %arg0 : i32, i32
  }
  func.func @transform_4(%arg0: i32, %arg1: i32) -> (i32, i32) {
    %c0_i32 = arith.constant 0 : i32
    return %arg1, %arg0 : i32, i32
  }
  func.func @transform_5(%arg0: i32, %arg1: i32) -> (i32, i32) {
    %c0_i32 = arith.constant 0 : i32
    return %arg1, %arg0 : i32, i32
  }
}

module attributes {stable_mosaic.version = 11 : i64} {
  func.func @kernel(%arg0: i32, %arg1: i32, %arg2: memref<8x32xf32, #tpu.memory_space<vmem>>, %arg3: memref<8x128xf32, #tpu.memory_space<vmem>>, %arg4: memref<32x512xf32, #tpu.memory_space<vmem>>, %arg5: memref<1x512xf32, #tpu.memory_space<vmem>>, %arg6: memref<8x128xf32, #tpu.memory_space<vmem>>, %arg7: memref<8x128xf32, #tpu.memory_space<vmem>>) attributes {dimension_semantics = [#tpu.dimension_semantics<parallel>, #tpu.dimension_semantics<parallel>], iteration_bounds = array<i64: 1, 1>, scalar_prefetch = 0 : i64, scratch_operands = 0 : i64, tpu.core_type = #tpu.core_type<tc>, window_params = [{transform_indices = @transform_0, window_bounds = array<i64: 8, 32>}, {transform_indices = @transform_1, window_bounds = array<i64: 8, 128>}, {transform_indices = @transform_2, window_bounds = array<i64: 32, 512>}, {transform_indices = @transform_3, window_bounds = array<i64: 1, 512>}, {transform_indices = @transform_4, window_bounds = array<i64: 8, 128>}, {transform_indices = @transform_5, window_bounds = array<i64: 8, 128>}]} {
    %c0 = arith.constant 0 : index
    %c0_0 = arith.constant 0 : index
    %0 = vector.load %arg4[%c0, %c0_0] : memref<32x512xf32, #tpu.memory_space<vmem>>, vector<32x512xf32>
    %c0_1 = arith.constant 0 : index
    %c0_2 = arith.constant 0 : index
    %1 = vector.load %arg2[%c0_1, %c0_2] : memref<8x32xf32, #tpu.memory_space<vmem>>, vector<8x32xf32>
    %cst = arith.constant dense<0.000000e+00> : vector<8x512xf32>
    %2 = tpu.matmul %1, %0, %cst {dimension_numbers = #tpu.dot_dimension_numbers<[1], [0], [0], [1], [0, 0, 1, 1], [], []>} : vector<8x32xf32>, vector<32x512xf32>, vector<8x512xf32> -> vector<8x512xf32>
    %c0_3 = arith.constant 0 : index
    %c0_4 = arith.constant 0 : index
    %3 = vector.load %arg5[%c0_3, %c0_4] : memref<1x512xf32, #tpu.memory_space<vmem>>, vector<1x512xf32>
    %4 = vector.broadcast %3 : vector<1x512xf32> to vector<8x512xf32>
    %5 = arith.addf %2, %4 : vector<8x512xf32>
    %6 = vector.extract_strided_slice %5 {offsets = [0, 0], sizes = [8, 128], strides = [1, 1]} : vector<8x512xf32> to vector<8x128xf32>
    %7 = vector.extract_strided_slice %5 {offsets = [0, 128], sizes = [8, 128], strides = [1, 1]} : vector<8x512xf32> to vector<8x128xf32>
    %8 = vector.extract_strided_slice %5 {offsets = [0, 256], sizes = [8, 128], strides = [1, 1]} : vector<8x512xf32> to vector<8x128xf32>
    %9 = vector.extract_strided_slice %5 {offsets = [0, 384], sizes = [8, 128], strides = [1, 1]} : vector<8x512xf32> to vector<8x128xf32>
    %c0_5 = arith.constant 0 : index
    %c0_6 = arith.constant 0 : index
    %10 = vector.load %arg3[%c0_5, %c0_6] : memref<8x128xf32, #tpu.memory_space<vmem>>, vector<8x128xf32>
    %cst_7 = arith.constant 5.000000e-01 : f32
    %11 = vector.broadcast %cst_7 : f32 to vector<8x128xf32>
    %12 = arith.mulf %11, %6 : vector<8x128xf32>
    %13 = math.tanh %12 : vector<8x128xf32>
    %cst_8 = arith.constant 5.000000e-01 : f32
    %14 = vector.broadcast %cst_8 : f32 to vector<8x128xf32>
    %15 = arith.mulf %14, %13 : vector<8x128xf32>
    %cst_9 = arith.constant 5.000000e-01 : f32
    %16 = vector.broadcast %cst_9 : f32 to vector<8x128xf32>
    %17 = arith.addf %15, %16 : vector<8x128xf32>
    %cst_10 = arith.constant 5.000000e-01 : f32
    %18 = vector.broadcast %cst_10 : f32 to vector<8x128xf32>
    %19 = arith.mulf %18, %7 : vector<8x128xf32>
    %20 = math.tanh %19 : vector<8x128xf32>
    %cst_11 = arith.constant 5.000000e-01 : f32
    %21 = vector.broadcast %cst_11 : f32 to vector<8x128xf32>
    %22 = arith.mulf %21, %20 : vector<8x128xf32>
    %cst_12 = arith.constant 5.000000e-01 : f32
    %23 = vector.broadcast %cst_12 : f32 to vector<8x128xf32>
    %24 = arith.addf %22, %23 : vector<8x128xf32>
    %cst_13 = arith.constant 5.000000e-01 : f32
    %25 = vector.broadcast %cst_13 : f32 to vector<8x128xf32>
    %26 = arith.mulf %25, %9 : vector<8x128xf32>
    %27 = math.tanh %26 : vector<8x128xf32>
    %cst_14 = arith.constant 5.000000e-01 : f32
    %28 = vector.broadcast %cst_14 : f32 to vector<8x128xf32>
    %29 = arith.mulf %28, %27 : vector<8x128xf32>
    %cst_15 = arith.constant 5.000000e-01 : f32
    %30 = vector.broadcast %cst_15 : f32 to vector<8x128xf32>
    %31 = arith.addf %29, %30 : vector<8x128xf32>
    %32 = math.tanh %8 : vector<8x128xf32>
    %33 = arith.mulf %24, %10 : vector<8x128xf32>
    %34 = arith.mulf %17, %32 : vector<8x128xf32>
    %35 = arith.addf %33, %34 : vector<8x128xf32>
    %36 = math.tanh %35 : vector<8x128xf32>
    %37 = arith.mulf %31, %36 : vector<8x128xf32>
    %c0_16 = arith.constant 0 : index
    %c0_17 = arith.constant 0 : index
    %38 = vector.load %arg6[%c0_16, %c0_17] : memref<8x128xf32, #tpu.memory_space<vmem>>, vector<8x128xf32>
    tpu.vector_store %arg6[%c0_16, %c0_17], %37 {strides = array<i32>} : memref<8x128xf32, #tpu.memory_space<vmem>>, vector<8x128xf32>,
    %c0_18 = arith.constant 0 : index
    %c0_19 = arith.constant 0 : index
    %39 = vector.load %arg7[%c0_18, %c0_19] : memref<8x128xf32, #tpu.memory_space<vmem>>, vector<8x128xf32>
    tpu.vector_store %arg7[%c0_18, %c0_19], %35 {strides = array<i32>} : memref<8x128xf32, #tpu.memory_space<vmem>>, vector<8x128xf32>,
    return
  }
  func.func @transform_0(%arg0: i32, %arg1: i32) -> (i32, i32) {
    %c0_i32 = arith.constant 0 : i32
    %c0_i32_0 = arith.constant 0 : i32
    return %arg1, %c0_i32 : i32, i32
  }
  func.func @transform_1(%arg0: i32, %arg1: i32) -> (i32, i32) {
    %c0_i32 = arith.constant 0 : i32
    return %arg1, %arg0 : i32, i32
  }
  func.func @transform_2(%arg0: i32, %arg1: i32) -> (i32, i32) {
    %c0_i32 = arith.constant 0 : i32
    %c0_i32_0 = arith.constant 0 : i32
    return %c0_i32, %arg0 : i32, i32
  }
  func.func @transform_3(%arg0: i32, %arg1: i32) -> (i32, i32) {
    %c0_i32 = arith.constant 0 : i32
    %c0_i32_0 = arith.constant 0 : i32
    return %c0_i32, %arg0 : i32, i32
  }
  func.func @transform_4(%arg0: i32, %arg1: i32) -> (i32, i32) {
    %c0_i32 = arith.constant 0 : i32
    return %arg1, %arg0 : i32, i32
  }
  func.func @transform_5(%arg0: i32, %arg1: i32) -> (i32, i32) {
    %c0_i32 = arith.constant 0 : i32
    return %arg1, %arg0 : i32, i32
  }
}

</mosaic_0001>

<llo_original>
// kernel: tpu_custom_call.1
$region0: #{tpu_custom_call.1}
  #allocation0 [shape = 'u32[]', space=smem, size = 0x4, offset = 0x4, fixed_abs, tag = 'smem constant byte address 0x4 - core index']
  #allocation1 [shape = 'u32[144,128]{1,0:T(1,128)}', space=vmem, size = 0x12000, scoped, tag = 'internal scratch']
  %s0 = inlined_call_operand.hbm [shape: f32[8,32], index: 0, kind: input, shape index: {}]
  %s1 = inlined_call_operand.hbm [shape: f32[8,128], index: 1, kind: input, shape index: {}]
  %s2 = inlined_call_operand.hbm [shape: f32[32,512], index: 2, kind: input, shape index: {}]
  %s3 = inlined_call_operand.vmem [shape: f32[1,512], index: 3, kind: input, shape index: {}]
  %s4 = inlined_call_operand.hbm [shape: f32[8,128], index: 4, kind: output, shape index: {0}]
  %s5 = inlined_call_operand.hbm [shape: f32[8,128], index: 5, kind: output, shape index: {1}]
  %6 = xla_tuple %s4, %s5
  %s7 = sld [smem:[#allocation0]]
  $region46: #{tpu_custom_call.1} parent=0
    _
  %s9 = ssub.s32 1, %s7
  %s10 = scalar_select 0, %s9, %s7
  $region1: #{tpu_custom_call.1} parent=0
    #allocation2 [shape = 'u8[4096]{0}', space=vmem, size = 0x1000, scoped, tag = 'input window, operand 0, single buffered']
    #allocation3 [shape = 's32[1]{0}', space=sflag, size = 0x4, scoped, tag = 'scoped memory for tpu_custom_call.1']
    #allocation4 [shape = 's32[1]{0}', space=sflag, size = 0x4, scoped, tag = 'scoped memory for tpu_custom_call.1']
    #allocation5 [shape = 'u8[4096]{0}', space=vmem, size = 0x1000, scoped, tag = 'input window, operand 1, single buffered']
    #allocation6 [shape = 's32[1]{0}', space=sflag, size = 0x4, scoped, tag = 'scoped memory for tpu_custom_call.1']
    #allocation7 [shape = 'u8[65536]{0}', space=vmem, size = 0x10000, scoped, tag = 'input window, operand 2, single buffered']
    #allocation8 [shape = 'u8[4096]{0}', space=vmem, size = 0x1000, scoped, tag = 'output window, operand 0, single buffered']
    #allocation9 [shape = 'u8[4096]{0}', space=vmem, size = 0x1000, scoped, tag = 'output window, operand 1, single buffered']
    #allocation10 [shape = 's32[1]{0}', space=sflag, size = 0x4, scoped, tag = 'scoped memory for tpu_custom_call.1']
    %11 = vsyncpa [#allocation3], 0
    %12 = vsyncpa [#allocation6], 0
    %13 = vsyncpa [#allocation4], 0
    %14 = vsyncpa [#allocation10], 0
    // Predicated region
    $region2: #{tpu_custom_call.1} parent=1 // pred_check
      _
    $region3: #{tpu_custom_call.1} parent=1 // pred_check_branch
      %16 = sbr.rel (0) target = $region5
    $region4: #{tpu_custom_call.1} parent=1 // pred_region
      %s18 = ssub.s32 128, 128
      %19 = vsyncadd [#allocation3], %s18
      %s21 = sshll.u32 [#allocation2], 4
      %s22 = int_to_ptr.vmem [resolvable:$true] %s21
      %24 = dma.hbm_to_vmem [thread:$0]  %s0, 128, %s22, [#allocation3]
    $region5: #{tpu_custom_call.1} parent=1 // pred_fallthru
      _
    // Predicated region
    $region6: #{tpu_custom_call.1} parent=1 // pred_check
      _
    $region7: #{tpu_custom_call.1} parent=1 // pred_check_branch
      %26 = sbr.rel (0) target = $region9
    $region8: #{tpu_custom_call.1} parent=1 // pred_region
      %s28 = ssub.s32 128, 128
      %29 = vsyncadd [#allocation6], %s28
      %s31 = sshll.u32 [#allocation5], 4
      %s32 = int_to_ptr.vmem [resolvable:$true] %s31
      %34 = dma.hbm_to_vmem [thread:$0]  %s1, 128, %s32, [#allocation6]
    $region9: #{tpu_custom_call.1} parent=1 // pred_fallthru
      _
    // Predicated region
    $region10: #{tpu_custom_call.1} parent=1 // pred_check
      _
    $region11: #{tpu_custom_call.1} parent=1 // pred_check_branch
      %36 = sbr.rel (0) target = $region13
    $region12: #{tpu_custom_call.1} parent=1 // pred_region
      %s38 = ssub.s32 2048, 2048
      %39 = vsyncadd [#allocation6], %s38
      %s40 = sshll.u32 [#allocation7], 4
      %s41 = int_to_ptr.vmem [resolvable:$true] %s40
      %46 = dma.hbm_to_vmem [thread:$0]  %s2, 2048, %s41, [#allocation6], 512, 512, 32
    $region13: #{tpu_custom_call.1} parent=1 // pred_fallthru
      _
    // Predicated region
    $region14: #{tpu_custom_call.1} parent=1 // pred_check
      _
    $region15: #{tpu_custom_call.1} parent=1 // pred_check_branch
      %48 = sbr.rel (0) target = $region17
    $region16: #{tpu_custom_call.1} parent=1 // pred_region
      _
    $region17: #{tpu_custom_call.1} parent=1 // pred_fallthru
      _
    // Predicated region
    $region18: #{tpu_custom_call.1} parent=1 // pred_check
      _
    $region19: #{tpu_custom_call.1} parent=1 // pred_check_branch
      %50 = sbr.rel (0) target = $region21
    $region20: #{tpu_custom_call.1} parent=1 // pred_region
      %51 = dma.done [#allocation3], 128
    $region21: #{tpu_custom_call.1} parent=1 // pred_fallthru
      _
    // Predicated region
    $region22: #{tpu_custom_call.1} parent=1 // pred_check
      _
    $region23: #{tpu_custom_call.1} parent=1 // pred_check_branch
      %53 = sbr.rel (0) target = $region25
    $region24: #{tpu_custom_call.1} parent=1 // pred_region
      %54 = dma.done [#allocation6], 128
    $region25: #{tpu_custom_call.1} parent=1 // pred_fallthru
      _
    // Predicated region
    $region26: #{tpu_custom_call.1} parent=1 // pred_check
      _
    $region27: #{tpu_custom_call.1} parent=1 // pred_check_branch
      %56 = sbr.rel (0) target = $region29
    $region28: #{tpu_custom_call.1} parent=1 // pred_region
      %57 = dma.done [#allocation6], 2048
    $region29: #{tpu_custom_call.1} parent=1 // pred_fallthru
      _
    %v58 = vld [vmem:[#allocation7] sm:$0xff]
    %v59 = vld [vmem:[#allocation7 + $0x8] sm:$0xff]
    %v60 = vld [vmem:[#allocation7 + $0x10] sm:$0xff]
    %v61 = vld [vmem:[#allocation7 + $0x18] sm:$0xff]
    %v62 = vld [vmem:[#allocation7 + $0x20] sm:$0xff]
    %v63 = vld [vmem:[#allocation7 + $0x28] sm:$0xff]
    %v64 = vld [vmem:[#allocation7 + $0x30] sm:$0xff]
    %v65 = vld [vmem:[#allocation7 + $0x38] sm:$0xff]
    %v66 = vld [vmem:[#allocation7 + $0x40] sm:$0xff]
    %v67 = vld [vmem:[#allocation7 + $0x48] sm:$0xff]
    %v68 = vld [vmem:[#allocation7 + $0x50] sm:$0xff]
    %v69 = vld [vmem:[#allocation7 + $0x58] sm:$0xff]
    %v70 = vld [vmem:[#allocation7 + $0x60] sm:$0xff]
    %v71 = vld [vmem:[#allocation7 + $0x68] sm:$0xff]
    %v72 = vld [vmem:[#allocation7 + $0x70] sm:$0xff]
    %v73 = vld [vmem:[#allocation7 + $0x78] sm:$0xff]
    %v74 = vld [vmem:[#allocation2] sm:$0xff]
    %v75 = vld [vmem:[%s3] sm:$0xf]
    %v77 = vlaneseq
    %v78 = vshrl.u32 %v77, 7
    %v79 = vsub.s32 0, %v78
    %v80 = vrot.slane %v75, %v79
    %v81 = vlaneseq
    %v82 = vshrl.u32 %v81, 7
    %v83 = vsub.s32 1, %v82
    %v84 = vrot.slane %v75, %v83
    %v85 = vlaneseq
    %v86 = vshrl.u32 %v85, 7
    %v87 = vsub.s32 2, %v86
    %v88 = vrot.slane %v75, %v87
    %v89 = vlaneseq
    %v90 = vshrl.u32 %v89, 7
    %v91 = vsub.s32 3, %v90
    %v92 = vrot.slane %v75, %v91
    %vm97 = vcmask 261120
    %v99 = vsel %vm97, %v74, 0
    %101 = vmatprep.subr.mxu0 0.0
    %102 = vmatpush1.msra.mxu0 0.0
    %103 = vmatprep.subr.mxu0 0.0
    %104 = vmatpush1.msra.mxu0 0.0
    %105 = vmatprep.subr.mxu0 0.0
    %106 = vmatpush1.msra.mxu0 0.0
    %107 = vmatprep.subr.mxu0 0.0
    %108 = vmatpush1.msra.mxu0 0.0
    %109 = vmatprep.subr.mxu0 0.0
    %110 = vmatpush1.msra.mxu0 0.0
    %111 = vmatprep.subr.mxu0 0.0
    %112 = vmatpush1.msra.mxu0 0.0
    %113 = vmatprep.subr.mxu0 0.0
    %114 = vmatpush1.msra.mxu0 0.0
    %115 = vmatprep.subr.mxu0 0.0
    %116 = vmatpush1.msra.mxu0 0.0
    %117 = vmatprep.subr.mxu0 0.0
    %118 = vmatpush1.msra.mxu0 0.0
    %119 = vmatprep.subr.mxu0 0.0
    %120 = vmatpush1.msra.mxu0 0.0
    %121 = vmatprep.subr.mxu0 0.0
    %122 = vmatpush1.msra.mxu0 0.0
    %123 = vmatprep.subr.mxu0 0.0
    %124 = vmatpush1.msra.mxu0 0.0
    %125 = vmatprep.subr.mxu0 %v71
    %126 = vmatpush1.msra.mxu0 %v70
    %127 = vmatprep.subr.mxu0 %v67
    %128 = vmatpush1.msra.mxu0 %v66
    %129 = vmatprep.subr.mxu0 %v63
    %130 = vmatpush1.msra.mxu0 %v62
    %131 = vmatprep.subr.mxu0 %v59
    %132 = vmatpush1.msra.mxu0 %v58
    %133 = vmatprep.subr.mxu0 0.0
    %134 = vmatpush2.msra.mxu0 0.0
    %135 = vmatprep.subr.mxu0 0.0
    %136 = vmatpush2.msra.mxu0 0.0
    %137 = vmatprep.subr.mxu0 0.0
    %138 = vmatpush2.msra.mxu0 0.0
    %139 = vmatprep.subr.mxu0 0.0
    %140 = vmatpush2.msra.mxu0 0.0
    %141 = vmatprep.subr.mxu0 0.0
    %142 = vmatpush2.msra.mxu0 0.0
    %143 = vmatprep.subr.mxu0 0.0
    %144 = vmatpush2.msra.mxu0 0.0
    %145 = vmatprep.subr.mxu0 0.0
    %146 = vmatpush2.msra.mxu0 0.0
    %147 = vmatprep.subr.mxu0 0.0
    %148 = vmatpush2.msra.mxu0 0.0
    %149 = vmatprep.subr.mxu0 0.0
    %150 = vmatpush2.msra.mxu0 0.0
    %151 = vmatprep.subr.mxu0 0.0
    %152 = vmatpush2.msra.mxu0 0.0
    %153 = vmatprep.subr.mxu0 0.0
    %154 = vmatpush2.msra.mxu0 0.0
    %155 = vmatprep.subr.mxu0 0.0
    %156 = vmatpush2.msra.mxu0 0.0
    %157 = vmatprep.subr.mxu0 0.0
    %158 = vmatpush2.msra.mxu0 0.0
    %159 = vmatprep.subr.mxu0 0.0
    %160 = vmatpush2.msra.mxu0 0.0
    %161 = vmatprep.subr.mxu0 0.0
    %162 = vmatpush2.msra.mxu0 0.0
    %163 = vmatprep.subr.mxu0 0.0
    %164 = vmatpush2.msra.mxu0 0.0
    %165 = vmatprep.mubr.f32.mxu0 0.0
    %166 = vmatmul.mubr.f32.gmra.mxu0 %v99
    %v167 = vpop.f32.mrf.mxu0
    %v168 = vadd.f32 %v80, %v167
    %v169 = vpop.f32.mrf.mxu0
    %v170 = vadd.f32 %v84, %v169
    %171 = vdwg.mxu0
    %172 = vmatprep.subr.mxu0 0.0
    %173 = vmatpush1.msra.mxu0 0.0
    %174 = vmatprep.subr.mxu0 0.0
    %175 = vmatpush1.msra.mxu0 0.0
    %176 = vmatprep.subr.mxu0 0.0
    %177 = vmatpush1.msra.mxu0 0.0
    %178 = vmatprep.subr.mxu0 0.0
    %179 = vmatpush1.msra.mxu0 0.0
    %180 = vmatprep.subr.mxu0 0.0
    %181 = vmatpush1.msra.mxu0 0.0
    %182 = vmatprep.subr.mxu0 0.0
    %183 = vmatpush1.msra.mxu0 0.0
    %184 = vmatprep.subr.mxu0 0.0
    %185 = vmatpush1.msra.mxu0 0.0
    %186 = vmatprep.subr.mxu0 0.0
    %187 = vmatpush1.msra.mxu0 0.0
    %188 = vmatprep.subr.mxu0 0.0
    %189 = vmatpush1.msra.mxu0 0.0
    %190 = vmatprep.subr.mxu0 0.0
    %191 = vmatpush1.msra.mxu0 0.0
    %192 = vmatprep.subr.mxu0 0.0
    %193 = vmatpush1.msra.mxu0 0.0
    %194 = vmatprep.subr.mxu0 0.0
    %195 = vmatpush1.msra.mxu0 0.0
    %196 = vmatprep.subr.mxu0 %v73
    %197 = vmatpush1.msra.mxu0 %v72
    %198 = vmatprep.subr.mxu0 %v69
    %199 = vmatpush1.msra.mxu0 %v68
    %200 = vmatprep.subr.mxu0 %v65
    %201 = vmatpush1.msra.mxu0 %v64
    %202 = vmatprep.subr.mxu0 %v61
    %203 = vmatpush1.msra.mxu0 %v60
    %204 = vmatprep.subr.mxu0 0.0
    %205 = vmatpush2.msra.mxu0 0.0
    %206 = vmatprep.subr.mxu0 0.0
    %207 = vmatpush2.msra.mxu0 0.0
    %208 = vmatprep.subr.mxu0 0.0
    %209 = vmatpush2.msra.mxu0 0.0
    %210 = vmatprep.subr.mxu0 0.0
    %211 = vmatpush2.msra.mxu0 0.0
    %212 = vmatprep.subr.mxu0 0.0
    %213 = vmatpush2.msra.mxu0 0.0
    %214 = vmatprep.subr.mxu0 0.0
    %215 = vmatpush2.msra.mxu0 0.0
    %216 = vmatprep.subr.mxu0 0.0
    %217 = vmatpush2.msra.mxu0 0.0
    %218 = vmatprep.subr.mxu0 0.0
    %219 = vmatpush2.msra.mxu0 0.0
    %220 = vmatprep.subr.mxu0 0.0
    %221 = vmatpush2.msra.mxu0 0.0
    %222 = vmatprep.subr.mxu0 0.0
    %223 = vmatpush2.msra.mxu0 0.0
    %224 = vmatprep.subr.mxu0 0.0
    %225 = vmatpush2.msra.mxu0 0.0
    %226 = vmatprep.subr.mxu0 0.0
    %227 = vmatpush2.msra.mxu0 0.0
    %228 = vmatprep.subr.mxu0 0.0
    %229 = vmatpush2.msra.mxu0 0.0
    %230 = vmatprep.subr.mxu0 0.0
    %231 = vmatpush2.msra.mxu0 0.0
    %232 = vmatprep.subr.mxu0 0.0
    %233 = vmatpush2.msra.mxu0 0.0
    %234 = vmatprep.subr.mxu0 0.0
    %235 = vmatpush2.msra.mxu0 0.0
    %236 = vmatprep.mubr.f32.mxu0 0.0
    %237 = vmatmul.mubr.f32.gmra.mxu0 %v99
    %v238 = vpop.f32.mrf.mxu0
    %v239 = vadd.f32 %v88, %v238
    %v240 = vpop.f32.mrf.mxu0
    %v241 = vadd.f32 %v92, %v240
    %242 = vdwg.mxu0
    %v243 = vld [vmem:[#allocation5] sm:$0xff]
    %v244 = vmul.f32 %v168, 0.5
    %v245 = vtanh.pop %v244
    %v246 = vmul.f32 %v245, 0.5
    %v247 = vadd.f32 %v246, 0.5
    %v248 = vmul.f32 %v170, 0.5
    %v249 = vtanh.pop %v248
    %v250 = vmul.f32 %v249, 0.5
    %v251 = vadd.f32 %v250, 0.5
    %v252 = vmul.f32 %v241, 0.5
    %v253 = vtanh.pop %v252
    %v254 = vmul.f32 %v253, 0.5
    %v255 = vadd.f32 %v254, 0.5
    %v256 = vtanh.pop %v239
    %v257 = vmul.f32 %v251, %v243
    %v258 = vmul.f32 %v247, %v256
    %v259 = vadd.f32 %v257, %v258
    %v260 = vtanh.pop %v259
    %v261 = vmul.f32 %v255, %v260
    %262 = vst [vmem:[#allocation8] sm:$0xff] %v261
    %263 = vst [vmem:[#allocation9] sm:$0xff] %v259
    // Predicated region
    $region30: #{tpu_custom_call.1} parent=1 // pred_check
      _
    $region31: #{tpu_custom_call.1} parent=1 // pred_check_branch
      %265 = sbr.rel (0) target = $region33
    $region32: #{tpu_custom_call.1} parent=1 // pred_region
      %s267 = ssub.s32 128, 128
      %268 = vsyncadd [#allocation4], %s267
      %s270 = sshll.u32 [#allocation8], 4
      %s271 = int_to_ptr.vmem [resolvable:$true] %s270
      %273 = dma.vmem_to_hbm [thread:$0]  %s271, 128, %s4, [#allocation4]
    $region33: #{tpu_custom_call.1} parent=1 // pred_fallthru
      _
    // Predicated region
    $region34: #{tpu_custom_call.1} parent=1 // pred_check
      _
    $region35: #{tpu_custom_call.1} parent=1 // pred_check_branch
      %275 = sbr.rel (0) target = $region37
    $region36: #{tpu_custom_call.1} parent=1 // pred_region
      %s277 = ssub.s32 128, 128
      %278 = vsyncadd [#allocation10], %s277
      %s280 = sshll.u32 [#allocation9], 4
      %s281 = int_to_ptr.vmem [resolvable:$true] %s280
      %283 = dma.vmem_to_hbm [thread:$0]  %s281, 128, %s5, [#allocation10]
    $region37: #{tpu_custom_call.1} parent=1 // pred_fallthru
      _
    // Predicated region
    $region38: #{tpu_custom_call.1} parent=1 // pred_check
      _
    $region39: #{tpu_custom_call.1} parent=1 // pred_check_branch
      %285 = sbr.rel (0) target = $region41
    $region40: #{tpu_custom_call.1} parent=1 // pred_region
      %286 = dma.done [#allocation4], 128
    $region41: #{tpu_custom_call.1} parent=1 // pred_fallthru
      _
    // Predicated region
    $region42: #{tpu_custom_call.1} parent=1 // pred_check
      _
    $region43: #{tpu_custom_call.1} parent=1 // pred_check_branch
      %288 = sbr.rel (0) target = $region45
    $region44: #{tpu_custom_call.1} parent=1 // pred_region
      %289 = dma.done [#allocation10], 128
    $region45: #{tpu_custom_call.1} parent=1 // pred_fallthru
      _
    %290 = vsyncpa [#allocation3], 1
    %291 = vsyncpa [#allocation6], 1
    %292 = vsyncpa [#allocation4], 1
    %293 = vsyncpa [#allocation10], 1

// kernel: tpu_custom_call.1
$region0: #{tpu_custom_call.1}
  #allocation0 [shape = 'u32[]', space=smem, size = 0x4, offset = 0x4, fixed_abs, tag = 'smem constant byte address 0x4 - core index']
  #allocation1 [shape = 'u32[144,128]{1,0:T(1,128)}', space=vmem, size = 0x12000, scoped, tag = 'internal scratch']
  %s0 = inlined_call_operand.hbm [shape: f32[8,32], index: 0, kind: input, shape index: {}]
  %s1 = inlined_call_operand.hbm [shape: f32[8,128], index: 1, kind: input, shape index: {}]
  %s2 = inlined_call_operand.hbm [shape: f32[32,512], index: 2, kind: input, shape index: {}]
  %s3 = inlined_call_operand.vmem [shape: f32[1,512], index: 3, kind: input, shape index: {}]
  %s4 = inlined_call_operand.hbm [shape: f32[8,128], index: 4, kind: output, shape index: {0}]
  %s5 = inlined_call_operand.hbm [shape: f32[8,128], index: 5, kind: output, shape index: {1}]
  %6 = xla_tuple %s4, %s5
  %s7 = sld [smem:[#allocation0]]
  $region46: #{tpu_custom_call.1} parent=0
    _
  %s9 = ssub.s32 1, %s7
  %s10 = scalar_select 0, %s9, %s7
  $region1: #{tpu_custom_call.1} parent=0
    #allocation2 [shape = 'u8[4096]{0}', space=vmem, size = 0x1000, scoped, tag = 'input window, operand 0, single buffered']
    #allocation3 [shape = 's32[1]{0}', space=sflag, size = 0x4, scoped, tag = 'scoped memory for tpu_custom_call.1']
    #allocation4 [shape = 's32[1]{0}', space=sflag, size = 0x4, scoped, tag = 'scoped memory for tpu_custom_call.1']
    #allocation5 [shape = 'u8[4096]{0}', space=vmem, size = 0x1000, scoped, tag = 'input window, operand 1, single buffered']
    #allocation6 [shape = 's32[1]{0}', space=sflag, size = 0x4, scoped, tag = 'scoped memory for tpu_custom_call.1']
    #allocation7 [shape = 'u8[65536]{0}', space=vmem, size = 0x10000, scoped, tag = 'input window, operand 2, single buffered']
    #allocation8 [shape = 'u8[4096]{0}', space=vmem, size = 0x1000, scoped, tag = 'output window, operand 0, single buffered']
    #allocation9 [shape = 'u8[4096]{0}', space=vmem, size = 0x1000, scoped, tag = 'output window, operand 1, single buffered']
    #allocation10 [shape = 's32[1]{0}', space=sflag, size = 0x4, scoped, tag = 'scoped memory for tpu_custom_call.1']
    %11 = vsyncpa [#allocation3], 0
    %12 = vsyncpa [#allocation6], 0
    %13 = vsyncpa [#allocation4], 0
    %14 = vsyncpa [#allocation10], 0
    // Predicated region
    $region2: #{tpu_custom_call.1} parent=1 // pred_check
      _
    $region3: #{tpu_custom_call.1} parent=1 // pred_check_branch
      %16 = sbr.rel (0) target = $region5
    $region4: #{tpu_custom_call.1} parent=1 // pred_region
      %s18 = ssub.s32 128, 128
      %19 = vsyncadd [#allocation3], %s18
      %s21 = sshll.u32 [#allocation2], 4
      %s22 = int_to_ptr.vmem [resolvable:$true] %s21
      %24 = dma.hbm_to_vmem [thread:$0]  %s0, 128, %s22, [#allocation3]
    $region5: #{tpu_custom_call.1} parent=1 // pred_fallthru
      _
    // Predicated region
    $region6: #{tpu_custom_call.1} parent=1 // pred_check
      _
    $region7: #{tpu_custom_call.1} parent=1 // pred_check_branch
      %26 = sbr.rel (0) target = $region9
    $region8: #{tpu_custom_call.1} parent=1 // pred_region
      %s28 = ssub.s32 128, 128
      %29 = vsyncadd [#allocation6], %s28
      %s31 = sshll.u32 [#allocation5], 4
      %s32 = int_to_ptr.vmem [resolvable:$true] %s31
      %34 = dma.hbm_to_vmem [thread:$0]  %s1, 128, %s32, [#allocation6]
    $region9: #{tpu_custom_call.1} parent=1 // pred_fallthru
      _
    // Predicated region
    $region10: #{tpu_custom_call.1} parent=1 // pred_check
      _
    $region11: #{tpu_custom_call.1} parent=1 // pred_check_branch
      %36 = sbr.rel (0) target = $region13
    $region12: #{tpu_custom_call.1} parent=1 // pred_region
      %s38 = ssub.s32 2048, 2048
      %39 = vsyncadd [#allocation6], %s38
      %s40 = sshll.u32 [#allocation7], 4
      %s41 = int_to_ptr.vmem [resolvable:$true] %s40
      %46 = dma.hbm_to_vmem [thread:$0]  %s2, 2048, %s41, [#allocation6], 512, 512, 32
    $region13: #{tpu_custom_call.1} parent=1 // pred_fallthru
      _
    // Predicated region
    $region14: #{tpu_custom_call.1} parent=1 // pred_check
      _
    $region15: #{tpu_custom_call.1} parent=1 // pred_check_branch
      %48 = sbr.rel (0) target = $region17
    $region16: #{tpu_custom_call.1} parent=1 // pred_region
      _
    $region17: #{tpu_custom_call.1} parent=1 // pred_fallthru
      _
    // Predicated region
    $region18: #{tpu_custom_call.1} parent=1 // pred_check
      _
    $region19: #{tpu_custom_call.1} parent=1 // pred_check_branch
      %50 = sbr.rel (0) target = $region21
    $region20: #{tpu_custom_call.1} parent=1 // pred_region
      %51 = dma.done [#allocation3], 128
    $region21: #{tpu_custom_call.1} parent=1 // pred_fallthru
      _
    // Predicated region
    $region22: #{tpu_custom_call.1} parent=1 // pred_check
      _
    $region23: #{tpu_custom_call.1} parent=1 // pred_check_branch
      %53 = sbr.rel (0) target = $region25
    $region24: #{tpu_custom_call.1} parent=1 // pred_region
      %54 = dma.done [#allocation6], 128
    $region25: #{tpu_custom_call.1} parent=1 // pred_fallthru
      _
    // Predicated region
    $region26: #{tpu_custom_call.1} parent=1 // pred_check
      _
    $region27: #{tpu_custom_call.1} parent=1 // pred_check_branch
      %56 = sbr.rel (0) target = $region29
    $region28: #{tpu_custom_call.1} parent=1 // pred_region
      %57 = dma.done [#allocation6], 2048
    $region29: #{tpu_custom_call.1} parent=1 // pred_fallthru
      _
    %v58 = vld [vmem:[#allocation7] sm:$0xff]
    %v59 = vld [vmem:[#allocation7 + $0x8] sm:$0xff]
    %v60 = vld [vmem:[#allocation7 + $0x10] sm:$0xff]
    %v61 = vld [vmem:[#allocation7 + $0x18] sm:$0xff]
    %v62 = vld [vmem:[#allocation7 + $0x20] sm:$0xff]
    %v63 = vld [vmem:[#allocation7 + $0x28] sm:$0xff]
    %v64 = vld [vmem:[#allocation7 + $0x30] sm:$0xff]
    %v65 = vld [vmem:[#allocation7 + $0x38] sm:$0xff]
    %v66 = vld [vmem:[#allocation7 + $0x40] sm:$0xff]
    %v67 = vld [vmem:[#allocation7 + $0x48] sm:$0xff]
    %v68 = vld [vmem:[#allocation7 + $0x50] sm:$0xff]
    %v69 = vld [vmem:[#allocation7 + $0x58] sm:$0xff]
    %v70 = vld [vmem:[#allocation7 + $0x60] sm:$0xff]
    %v71 = vld [vmem:[#allocation7 + $0x68] sm:$0xff]
    %v72 = vld [vmem:[#allocation7 + $0x70] sm:$0xff]
    %v73 = vld [vmem:[#allocation7 + $0x78] sm:$0xff]
    %v74 = vld [vmem:[#allocation2] sm:$0xff]
    %v75 = vld [vmem:[%s3] sm:$0xf]
    %v77 = vlaneseq
    %v78 = vshrl.u32 %v77, 7
    %v79 = vsub.s32 0, %v78
    %v80 = vrot.slane %v75, %v79
    %v81 = vlaneseq
    %v82 = vshrl.u32 %v81, 7
    %v83 = vsub.s32 1, %v82
    %v84 = vrot.slane %v75, %v83
    %v85 = vlaneseq
    %v86 = vshrl.u32 %v85, 7
    %v87 = vsub.s32 2, %v86
    %v88 = vrot.slane %v75, %v87
    %v89 = vlaneseq
    %v90 = vshrl.u32 %v89, 7
    %v91 = vsub.s32 3, %v90
    %v92 = vrot.slane %v75, %v91
    %vm97 = vcmask 261120
    %v99 = vsel %vm97, %v74, 0
    %101 = vmatprep.subr.mxu0 0.0
    %102 = vmatpush1.msra.mxu0 0.0
    %103 = vmatprep.subr.mxu0 0.0
    %104 = vmatpush1.msra.mxu0 0.0
    %105 = vmatprep.subr.mxu0 0.0
    %106 = vmatpush1.msra.mxu0 0.0
    %107 = vmatprep.subr.mxu0 0.0
    %108 = vmatpush1.msra.mxu0 0.0
    %109 = vmatprep.subr.mxu0 0.0
    %110 = vmatpush1.msra.mxu0 0.0
    %111 = vmatprep.subr.mxu0 0.0
    %112 = vmatpush1.msra.mxu0 0.0
    %113 = vmatprep.subr.mxu0 0.0
    %114 = vmatpush1.msra.mxu0 0.0
    %115 = vmatprep.subr.mxu0 0.0
    %116 = vmatpush1.msra.mxu0 0.0
    %117 = vmatprep.subr.mxu0 0.0
    %118 = vmatpush1.msra.mxu0 0.0
    %119 = vmatprep.subr.mxu0 0.0
    %120 = vmatpush1.msra.mxu0 0.0
    %121 = vmatprep.subr.mxu0 0.0
    %122 = vmatpush1.msra.mxu0 0.0
    %123 = vmatprep.subr.mxu0 0.0
    %124 = vmatpush1.msra.mxu0 0.0
    %125 = vmatprep.subr.mxu0 %v71
    %126 = vmatpush1.msra.mxu0 %v70
    %127 = vmatprep.subr.mxu0 %v67
    %128 = vmatpush1.msra.mxu0 %v66
    %129 = vmatprep.subr.mxu0 %v63
    %130 = vmatpush1.msra.mxu0 %v62
    %131 = vmatprep.subr.mxu0 %v59
    %132 = vmatpush1.msra.mxu0 %v58
    %133 = vmatprep.subr.mxu0 0.0
    %134 = vmatpush2.msra.mxu0 0.0
    %135 = vmatprep.subr.mxu0 0.0
    %136 = vmatpush2.msra.mxu0 0.0
    %137 = vmatprep.subr.mxu0 0.0
    %138 = vmatpush2.msra.mxu0 0.0
    %139 = vmatprep.subr.mxu0 0.0
    %140 = vmatpush2.msra.mxu0 0.0
    %141 = vmatprep.subr.mxu0 0.0
    %142 = vmatpush2.msra.mxu0 0.0
    %143 = vmatprep.subr.mxu0 0.0
    %144 = vmatpush2.msra.mxu0 0.0
    %145 = vmatprep.subr.mxu0 0.0
    %146 = vmatpush2.msra.mxu0 0.0
    %147 = vmatprep.subr.mxu0 0.0
    %148 = vmatpush2.msra.mxu0 0.0
    %149 = vmatprep.subr.mxu0 0.0
    %150 = vmatpush2.msra.mxu0 0.0
    %151 = vmatprep.subr.mxu0 0.0
    %152 = vmatpush2.msra.mxu0 0.0
    %153 = vmatprep.subr.mxu0 0.0
    %154 = vmatpush2.msra.mxu0 0.0
    %155 = vmatprep.subr.mxu0 0.0
    %156 = vmatpush2.msra.mxu0 0.0
    %157 = vmatprep.subr.mxu0 0.0
    %158 = vmatpush2.msra.mxu0 0.0
    %159 = vmatprep.subr.mxu0 0.0
    %160 = vmatpush2.msra.mxu0 0.0
    %161 = vmatprep.subr.mxu0 0.0
    %162 = vmatpush2.msra.mxu0 0.0
    %163 = vmatprep.subr.mxu0 0.0
    %164 = vmatpush2.msra.mxu0 0.0
    %165 = vmatprep.mubr.f32.mxu0 0.0
    %166 = vmatmul.mubr.f32.gmra.mxu0 %v99
    %v167 = vpop.f32.mrf.mxu0
    %v168 = vadd.f32 %v80, %v167
    %v169 = vpop.f32.mrf.mxu0
    %v170 = vadd.f32 %v84, %v169
    %171 = vdwg.mxu0
    %172 = vmatprep.subr.mxu0 0.0
    %173 = vmatpush1.msra.mxu0 0.0
    %174 = vmatprep.subr.mxu0 0.0
    %175 = vmatpush1.msra.mxu0 0.0
    %176 = vmatprep.subr.mxu0 0.0
    %177 = vmatpush1.msra.mxu0 0.0
    %178 = vmatprep.subr.mxu0 0.0
    %179 = vmatpush1.msra.mxu0 0.0
    %180 = vmatprep.subr.mxu0 0.0
    %181 = vmatpush1.msra.mxu0 0.0
    %182 = vmatprep.subr.mxu0 0.0
    %183 = vmatpush1.msra.mxu0 0.0
    %184 = vmatprep.subr.mxu0 0.0
    %185 = vmatpush1.msra.mxu0 0.0
    %186 = vmatprep.subr.mxu0 0.0
    %187 = vmatpush1.msra.mxu0 0.0
    %188 = vmatprep.subr.mxu0 0.0
    %189 = vmatpush1.msra.mxu0 0.0
    %190 = vmatprep.subr.mxu0 0.0
    %191 = vmatpush1.msra.mxu0 0.0
    %192 = vmatprep.subr.mxu0 0.0
    %193 = vmatpush1.msra.mxu0 0.0
    %194 = vmatprep.subr.mxu0 0.0
    %195 = vmatpush1.msra.mxu0 0.0
    %196 = vmatprep.subr.mxu0 %v73
    %197 = vmatpush1.msra.mxu0 %v72
    %198 = vmatprep.subr.mxu0 %v69
    %199 = vmatpush1.msra.mxu0 %v68
    %200 = vmatprep.subr.mxu0 %v65
    %201 = vmatpush1.msra.mxu0 %v64
    %202 = vmatprep.subr.mxu0 %v61
    %203 = vmatpush1.msra.mxu0 %v60
    %204 = vmatprep.subr.mxu0 0.0
    %205 = vmatpush2.msra.mxu0 0.0
    %206 = vmatprep.subr.mxu0 0.0
    %207 = vmatpush2.msra.mxu0 0.0
    %208 = vmatprep.subr.mxu0 0.0
    %209 = vmatpush2.msra.mxu0 0.0
    %210 = vmatprep.subr.mxu0 0.0
    %211 = vmatpush2.msra.mxu0 0.0
    %212 = vmatprep.subr.mxu0 0.0
    %213 = vmatpush2.msra.mxu0 0.0
    %214 = vmatprep.subr.mxu0 0.0
    %215 = vmatpush2.msra.mxu0 0.0
    %216 = vmatprep.subr.mxu0 0.0
    %217 = vmatpush2.msra.mxu0 0.0
    %218 = vmatprep.subr.mxu0 0.0
    %219 = vmatpush2.msra.mxu0 0.0
    %220 = vmatprep.subr.mxu0 0.0
    %221 = vmatpush2.msra.mxu0 0.0
    %222 = vmatprep.subr.mxu0 0.0
    %223 = vmatpush2.msra.mxu0 0.0
    %224 = vmatprep.subr.mxu0 0.0
    %225 = vmatpush2.msra.mxu0 0.0
    %226 = vmatprep.subr.mxu0 0.0
    %227 = vmatpush2.msra.mxu0 0.0
    %228 = vmatprep.subr.mxu0 0.0
    %229 = vmatpush2.msra.mxu0 0.0
    %230 = vmatprep.subr.mxu0 0.0
    %231 = vmatpush2.msra.mxu0 0.0
    %232 = vmatprep.subr.mxu0 0.0
    %233 = vmatpush2.msra.mxu0 0.0
    %234 = vmatprep.subr.mxu0 0.0
    %235 = vmatpush2.msra.mxu0 0.0
    %236 = vmatprep.mubr.f32.mxu0 0.0
    %237 = vmatmul.mubr.f32.gmra.mxu0 %v99
    %v238 = vpop.f32.mrf.mxu0
    %v239 = vadd.f32 %v88, %v238
    %v240 = vpop.f32.mrf.mxu0
    %v241 = vadd.f32 %v92, %v240
    %242 = vdwg.mxu0
    %v243 = vld [vmem:[#allocation5] sm:$0xff]
    %v244 = vmul.f32 %v168, 0.5
    %v245 = vtanh.pop %v244
    %v246 = vmul.f32 %v245, 0.5
    %v247 = vadd.f32 %v246, 0.5
    %v248 = vmul.f32 %v170, 0.5
    %v249 = vtanh.pop %v248
    %v250 = vmul.f32 %v249, 0.5
    %v251 = vadd.f32 %v250, 0.5
    %v252 = vmul.f32 %v241, 0.5
    %v253 = vtanh.pop %v252
    %v254 = vmul.f32 %v253, 0.5
    %v255 = vadd.f32 %v254, 0.5
    %v256 = vtanh.pop %v239
    %v257 = vmul.f32 %v251, %v243
    %v258 = vmul.f32 %v247, %v256
    %v259 = vadd.f32 %v257, %v258
    %v260 = vtanh.pop %v259
    %v261 = vmul.f32 %v255, %v260
    %262 = vst [vmem:[#allocation8] sm:$0xff] %v261
    %263 = vst [vmem:[#allocation9] sm:$0xff] %v259
    // Predicated region
    $region30: #{tpu_custom_call.1} parent=1 // pred_check
      _
    $region31: #{tpu_custom_call.1} parent=1 // pred_check_branch
      %265 = sbr.rel (0) target = $region33
    $region32: #{tpu_custom_call.1} parent=1 // pred_region
      %s267 = ssub.s32 128, 128
      %268 = vsyncadd [#allocation4], %s267
      %s270 = sshll.u32 [#allocation8], 4
      %s271 = int_to_ptr.vmem [resolvable:$true] %s270
      %273 = dma.vmem_to_hbm [thread:$0]  %s271, 128, %s4, [#allocation4]
    $region33: #{tpu_custom_call.1} parent=1 // pred_fallthru
      _
    // Predicated region
    $region34: #{tpu_custom_call.1} parent=1 // pred_check
      _
    $region35: #{tpu_custom_call.1} parent=1 // pred_check_branch
      %275 = sbr.rel (0) target = $region37
    $region36: #{tpu_custom_call.1} parent=1 // pred_region
      %s277 = ssub.s32 128, 128
      %278 = vsyncadd [#allocation10], %s277
      %s280 = sshll.u32 [#allocation9], 4
      %s281 = int_to_ptr.vmem [resolvable:$true] %s280
      %283 = dma.vmem_to_hbm [thread:$0]  %s281, 128, %s5, [#allocation10]
    $region37: #{tpu_custom_call.1} parent=1 // pred_fallthru
      _
    // Predicated region
    $region38: #{tpu_custom_call.1} parent=1 // pred_check
      _
    $region39: #{tpu_custom_call.1} parent=1 // pred_check_branch
      %285 = sbr.rel (0) target = $region41
    $region40: #{tpu_custom_call.1} parent=1 // pred_region
      %286 = dma.done [#allocation4], 128
    $region41: #{tpu_custom_call.1} parent=1 // pred_fallthru
      _
    // Predicated region
    $region42: #{tpu_custom_call.1} parent=1 // pred_check
      _
    $region43: #{tpu_custom_call.1} parent=1 // pred_check_branch
      %288 = sbr.rel (0) target = $region45
    $region44: #{tpu_custom_call.1} parent=1 // pred_region
      %289 = dma.done [#allocation10], 128
    $region45: #{tpu_custom_call.1} parent=1 // pred_fallthru
      _
    %290 = vsyncpa [#allocation3], 1
    %291 = vsyncpa [#allocation6], 1
    %292 = vsyncpa [#allocation4], 1
    %293 = vsyncpa [#allocation10], 1

</llo_original>
